<compile_context>
chip_gen: v6e
topology: v6e:2x2x1
jax: 0.10.0
libtpu: 0.0.40
codegen_flags: <defaults>
</compile_context>

<pallas_src>
import functools
import numpy as np
import jax
import jax.numpy as jnp
from jax.experimental import pallas as pl
from jax.experimental.pallas import tpu as pltpu

EPS = 1e-5
LBLK = 128                       # per-stage pooled block, lane-aligned
# Scoped VMEM budget: safe on all generations (v7x physical is 64 MiB/TC).
# Raise toward ~96-112 MiB on v5e/v6e at production shapes.
VMEM_LIMIT = 48 * 1024 * 1024


# --------------------------------------------------------------------------- #
# Static spatial operators (numpy, built once)
# --------------------------------------------------------------------------- #
def _adaptive_pool_matrix(in_size, out_size):
    P = np.zeros((out_size, in_size), np.float32)
    for i in range(out_size):
        start = (i * in_size) // out_size
        end = -((-(i + 1) * in_size) // out_size)     # ceil((i+1)*in/out)
        P[i, start:end] = 1.0 / (end - start)
    return P


def _bilinear_matrix(out_size, in_size):
    U = np.zeros((out_size, in_size), np.float32)
    if in_size == 1 or out_size == 1:
        U[:, 0] = 1.0
        return U
    for o in range(out_size):
        src = o * (in_size - 1) / (out_size - 1)
        lo = min(int(np.floor(src)), in_size - 1)
        hi = min(lo + 1, in_size - 1)
        frac = src - lo
        U[o, lo] += 1.0 - frac
        U[o, hi] += frac
    return U


def _per_stage_matrices(H, W, s):   # for the pure-JAX reference only
    return dict(Ph=jnp.asarray(_adaptive_pool_matrix(H, s)),
                Pw=jnp.asarray(_adaptive_pool_matrix(W, s)),
                Uh=jnp.asarray(_bilinear_matrix(H, s)),
                Uw=jnp.asarray(_bilinear_matrix(W, s)))


# --------------------------------------------------------------------------- #
# Roll-direction probe (host-side, one tiny pallas_call)
# --------------------------------------------------------------------------- #
def _probe_roll_sign():
    """Returns +1 if pltpu.roll matches jnp.roll (result[i] = x[i - shift]),
    -1 if the convention is reversed.  The 9-tap shifts are built against this
    sign so the bottleneck kernel is correct under either convention."""
    def k(x_ref, o_ref):
        o_ref[...] = pltpu.roll(x_ref[...], 1, axis=1)
    x = jnp.broadcast_to(jax.lax.iota(jnp.float32, 128), (8, 128))
    y = pl.pallas_call(k, out_shape=jax.ShapeDtypeStruct((8, 128), jnp.float32))(x)
    return 1 if float(y[0, 0]) == 127.0 else -1


# --------------------------------------------------------------------------- #
# Host-side constant preparation: fold BN, build fused pooling/upsample mats
# --------------------------------------------------------------------------- #
def prepare_constants(params, H, W, nk):
    sizes = params["sizes"]
    Cout, Cin = params["stage_w"][0].shape
    HW = H * W
    ns = len(sizes)
    CP = Cout * ns
    SP = ns * LBLK                      # lane-aligned pooled axis, one block/stage

    KT = np.zeros((HW, SP), np.float32)
    UT = np.zeros((SP, HW), np.float32)
    for i, s in enumerate(sizes):
        Ph = _adaptive_pool_matrix(H, s)
        Pw = _adaptive_pool_matrix(W, s)
        Uh = _bilinear_matrix(H, s)
        Uw = _bilinear_matrix(W, s)
        K = np.kron(Ph, Pw)             # (s*s, HW)
        Uf = np.kron(Uh, Uw)            # (HW, s*s)
        ss = s * s
        assert ss <= LBLK, "pooled grid does not fit one 128-lane block"
        KT[:, i * LBLK:i * LBLK + ss] = K.T
        UT[i * LBLK:i * LBLK + ss, :] = Uf.T

    # Stage 1x1 convs: fold BN scale into weights; shift becomes post-upsample bias.
    wstack = jnp.concatenate(
        [params["stage_scale"][i][:, None] * params["stage_w"][i]
         for i in range(ns)], axis=0)                                  # (CP, Cin)
    shift = jnp.concatenate(params["stage_shift"], axis=0)[:, None]    # (CP, 1)

    # 3x3 bottleneck: fold BN scale; canonical per-tap layout (9, Cout, C) so every
    # tap is a (Cout,K)x(K,HW) MXU matmul with no LHS relayout.
    w3 = params["bott_w"] * params["bott_scale"][:, None, None, None]  # (Cout, Ct, 3, 3)
    wp = jnp.transpose(w3[:, :CP], (2, 3, 0, 1)).reshape(9, Cout, CP)
    wx = jnp.transpose(w3[:, CP:], (2, 3, 0, 1)).reshape(9, Cout, Cin)
    bias = params["bott_shift"][:, None]                               # (Cout, 1)

    assert CP % nk == 0 and Cin % nk == 0, "K chunks must divide channel counts"
    if nk > 1:
        # Lane-dim chunking of the (9, Cout, C) weights needs 128-aligned chunks.
        assert (CP // nk) % 128 == 0 and (Cin // nk) % 128 == 0, \
            "NK>1 requires C/NK to be a multiple of 128 (use NK=1 at small shapes)"

    return dict(
        KT=jnp.asarray(KT, jnp.bfloat16),
        UT=jnp.asarray(UT, jnp.bfloat16),
        Wstack=wstack.astype(jnp.bfloat16),
        Shift=shift.astype(jnp.float32),
        WPtaps=wp.astype(jnp.bfloat16),
        WXtaps=wx.astype(jnp.bfloat16),
        Bias=bias.astype(jnp.float32),
        NK=nk,
        NS=ns,
        ROLL_SIGN=_probe_roll_sign())


# --------------------------------------------------------------------------- #
# Pallas kernels
# --------------------------------------------------------------------------- #
def _stages_kernel(x_ref, kt_ref, w_ref, ut_ref, shift_ref, o_ref, *, n_stages, cout):
    # x_ref: (1, Cin, HW) bf16   kt_ref: (HW, NS*128) bf16   w_ref: (NS*Cout, Cin) bf16
    # ut_ref: (NS*128, HW) bf16  shift_ref: (NS*Cout, 1) f32  o_ref: (1, NS*Cout, HW) bf16
    x = x_ref[0]
    pooled = jnp.dot(x, kt_ref[...], preferred_element_type=jnp.float32)   # (Cin, SP)
    pooled = pooled.astype(jnp.bfloat16)
    for i in range(n_stages):
        blk = pooled[:, i * LBLK:(i + 1) * LBLK]                # lane-aligned slice
        w_i = w_ref[i * cout:(i + 1) * cout, :]                 # (Cout, Cin)
        y = jnp.dot(w_i, blk, preferred_element_type=jnp.float32)          # (Cout, 128)
        up = jnp.dot(y.astype(jnp.bfloat16), ut_ref[i * LBLK:(i + 1) * LBLK, :],
                     preferred_element_type=jnp.float32)                   # (Cout, HW)
        o_ref[0, i * cout:(i + 1) * cout, :] = (
            up + shift_ref[i * cout:(i + 1) * cout, :]).astype(o_ref.dtype)


def _bottleneck_kernel(p_ref, x_ref, wp_ref, wx_ref, bias_ref, o_ref, acc_ref,
                       *, H, W, roll_sign):
    # p_ref: (1, KCp, HW) bf16      x_ref: (1, KCx, HW) bf16
    # wp_ref: (9, Cout, KCp) bf16   wx_ref: (9, Cout, KCx) bf16
    # bias_ref: (Cout, 1) f32       o_ref: (1, Cout, HW) bf16   acc_ref: (Cout, HW) f32
    k = pl.program_id(1)

    @pl.when(k == 0)
    def _init():
        acc_ref[...] = jnp.zeros_like(acc_ref)

    HW = H * W
    p = p_ref[0]
    xx = x_ref[0]

    pos = jax.lax.broadcasted_iota(jnp.int32, (1, HW), 1)
    row = pos // W
    col = pos % W
    col_lo = col > 0            # valid when tap reads column-1
    col_hi = col < W - 1        # valid when tap reads column+1
    row_lo = row > 0            # valid when tap reads row-1
    row_hi = row < H - 1        # valid when tap reads row+1

    acc = jnp.zeros(acc_ref.shape, jnp.float32)
    t = 0
    for dy in (-1, 0, 1):
        for dx in (-1, 0, 1):
            # Two consecutive accumulating matmuls per tap (MXU result-buffer friendly).
            c = jnp.dot(wp_ref[t], p, preferred_element_type=jnp.float32)
            c = c + jnp.dot(wx_ref[t], xx, preferred_element_type=jnp.float32)
            s = dy * W + dx
            if s != 0:
                # out[:, i] needs c[:, i + s]  ->  roll on the XLU (32-bit path).
                c = pltpu.roll(c, (-roll_sign * s) % HW, axis=1)
            valid = None
            if dx == 1:
                valid = col_hi
            elif dx == -1:
                valid = col_lo
            if dy == 1:
                valid = row_hi if valid is None else jnp.logical_and(valid, row_hi)
            elif dy == -1:
                valid = row_lo if valid is None else jnp.logical_and(valid, row_lo)
            if valid is not None:   # kill circular wrap (rows) and row-crossing (cols)
                c = jnp.where(valid, c, 0.0)
            acc = acc + c
            t += 1
    acc_ref[...] += acc

    @pl.when(k == pl.num_programs(1) - 1)
    def _finalize():
        o_ref[0] = (acc_ref[...] + bias_ref[...]).astype(o_ref.dtype)


# --------------------------------------------------------------------------- #
# pallas_call wrappers
# --------------------------------------------------------------------------- #
def _run_stages(x2, c):
    N, Cin, HW = x2.shape
    CP = c["Wstack"].shape[0]
    kernel = functools.partial(_stages_kernel, n_stages=c["NS"], cout=CP // c["NS"])
    return pl.pallas_call(
        kernel,
        out_shape=jax.ShapeDtypeStruct((N, CP, HW), jnp.bfloat16),
        grid=(N,),
        in_specs=[
            pl.BlockSpec((1, Cin, HW), lambda n: (n, 0, 0)),
            pl.BlockSpec(c["KT"].shape, lambda n: (0, 0)),      # constant -> DMA'd once
            pl.BlockSpec(c["Wstack"].shape, lambda n: (0, 0)),
            pl.BlockSpec(c["UT"].shape, lambda n: (0, 0)),
            pl.BlockSpec(c["Shift"].shape, lambda n: (0, 0)),
        ],
        out_specs=pl.BlockSpec((1, CP, HW), lambda n: (n, 0, 0)),
        compiler_params=pltpu.CompilerParams(
            dimension_semantics=("parallel",),
            vmem_limit_bytes=VMEM_LIMIT),
    )(x2, c["KT"], c["Wstack"], c["UT"], c["Shift"])


def _run_bottleneck(priors, x2, c, H, W):
    N, CP, HW = priors.shape
    Cin = x2.shape[1]
    Cout = c["WPtaps"].shape[1]
    nk = c["NK"]
    kcp, kcx = CP // nk, Cin // nk
    kernel = functools.partial(_bottleneck_kernel, H=H, W=W, roll_sign=c["ROLL_SIGN"])
    return pl.pallas_call(
        kernel,
        out_shape=jax.ShapeDtypeStruct((N, Cout, HW), jnp.bfloat16),
        grid=(N, nk),
        in_specs=[
            pl.BlockSpec((1, kcp, HW), lambda n, k: (n, k, 0)),
            pl.BlockSpec((1, kcx, HW), lambda n, k: (n, k, 0)),
            # NK=1 -> constant index_map: tap weights are fetched once and stay resident.
            pl.BlockSpec((9, Cout, kcp), lambda n, k: (0, 0, k)),
            pl.BlockSpec((9, Cout, kcx), lambda n, k: (0, 0, k)),
            pl.BlockSpec(c["Bias"].shape, lambda n, k: (0, 0)),
        ],
        out_specs=pl.BlockSpec((1, Cout, HW), lambda n, k: (n, 0, 0)),
        scratch_shapes=[pltpu.VMEM((Cout, HW), jnp.float32)],
        compiler_params=pltpu.CompilerParams(
            dimension_semantics=("parallel", "arbitrary"),
            vmem_limit_bytes=VMEM_LIMIT),
    )(priors, x2, c["WPtaps"], c["WXtaps"], c["Bias"])


def psp_forward(x, consts):
    N, Cin, H, W = x.shape
    x2 = x.reshape(N, Cin, H * W).astype(jnp.bfloat16)
    priors = _run_stages(x2, consts)                     # (N, 4*Cout, HW) bf16
    out2 = _run_bottleneck(priors, x2, consts, H, W)     # (N, Cout, HW)   bf16
    Cout = consts["WPtaps"].shape[1]
    return out2.reshape(N, Cout, H, W)


# --------------------------------------------------------------------------- #
# Deterministic parameter init
# --------------------------------------------------------------------------- #
def _bn_affine(key, c):
    k1, k2, k3, k4 = jax.random.split(key, 4)
    gamma = 1.0 + 0.1 * jax.random.normal(k1, (c,), jnp.float32)
    beta = 0.1 * jax.random.normal(k2, (c,), jnp.float32)
    running_mean = 0.1 * jax.random.normal(k3, (c,), jnp.float32)
    running_var = 1.0 + 0.1 * jax.random.uniform(k4, (c,), jnp.float32)
    scale = gamma / jnp.sqrt(running_var + EPS)
    shift = beta - running_mean * scale
    return scale, shift


def init_params(key, features, out_features, sizes):
    params = {"sizes": sizes, "stage_w": [], "stage_scale": [], "stage_shift": []}
    for i, _ in enumerate(sizes):
        kw = jax.random.fold_in(key, 10 + i)
        kb = jax.random.fold_in(key, 20 + i)
        w = 0.1 * jax.random.normal(kw, (out_features, features), jnp.float32)
        sc, sh = _bn_affine(kb, out_features)
        params["stage_w"].append(w)
        params["stage_scale"].append(sc)
        params["stage_shift"].append(sh)
    ct = features + len(sizes) * out_features
    kw = jax.random.fold_in(key, 30)
    kb = jax.random.fold_in(key, 31)
    params["bott_w"] = 0.05 * jax.random.normal(kw, (out_features, ct, 3, 3), jnp.float32)
    sc, sh = _bn_affine(kb, out_features)
    params["bott_scale"] = sc
    params["bott_shift"] = sh
    return params


# --------------------------------------------------------------------------- #
# Pure-JAX reference (independent path: einsums + lax.conv) for validation
# --------------------------------------------------------------------------- #
def reference(x, params, mats):
    priors = []
    for i in range(len(params["sizes"])):
        m = mats[i]
        pooled = jnp.einsum("sh,nchw->ncsw", m["Ph"], x)
        pooled = jnp.einsum("tw,ncsw->ncst", m["Pw"], pooled)
        y = jnp.einsum("oc,ncst->nost", params["stage_w"][i], pooled)
        y = (y * params["stage_scale"][i][None, :, None, None]
             + params["stage_shift"][i][None, :, None, None])
        up = jnp.einsum("hs,nost->noht", m["Uh"], y)
        up = jnp.einsum("wt,noht->nohw", m["Uw"], up)
        priors.append(up)
    cat = jnp.concatenate(priors + [x], axis=1)
    out = jax.lax.conv_general_dilated(
        cat, params["bott_w"], window_strides=(1, 1), padding="SAME",
        dimension_numbers=("NCHW", "OIHW", "NCHW"))
    out = (out * params["bott_scale"][None, :, None, None]
           + params["bott_shift"][None, :, None, None])
    return out


if __name__ == "__main__":
    key = jax.random.PRNGKey(0)
    kx, kp = jax.random.split(key)

    N, Cin, H, W = 2, 32, 16, 16      # small demo shapes
    Cout = 16                         # out_features (512 in the paper; small here)
    sizes = (1, 2, 4, 6)
    # NK=1: full-weight blocks resident in VMEM (no per-batch weight re-fetch).
    # At production channel counts use NK in {2,4} so each K chunk is a >=256
    # multiple of 128 for full MXU K-utilization.
    NK = 1

    x = jax.random.normal(kx, (N, Cin, H, W), jnp.float32)
    params = init_params(kp, Cin, Cout, sizes)
    consts = prepare_constants(params, H, W, NK)

    out = jax.block_until_ready(psp_forward(x, consts))
    assert out.shape == (N, Cout, H, W), out.shape
    assert bool(jnp.all(jnp.isfinite(out)))

    mats = [_per_stage_matrices(H, W, s) for s in sizes]
    ref = reference(x, params, mats)
    err = float(jnp.max(jnp.abs(out.astype(jnp.float32) - ref)))
    scale = float(jnp.max(jnp.abs(ref))) + 1e-6
    assert err / scale < 3e-2, f"relative error too large: {err} vs max |ref| {scale}"
    print("KERNEL_OK")
</pallas_src>

<mosaic_0001>
module attributes {stable_mosaic.version = 11 : i64} {
  func.func @k(%arg0: memref<8x128xf32, #tpu.memory_space<vmem>>, %arg1: memref<8x128xf32, #tpu.memory_space<vmem>>) attributes {dimension_semantics = [], scalar_prefetch = 0 : i64, scratch_operands = 0 : i64, tpu.core_type = #tpu.core_type<tc>} {
    %c0 = arith.constant 0 : index
    %c0_0 = arith.constant 0 : index
    %0 = vector.load %arg0[%c0, %c0_0] : memref<8x128xf32, #tpu.memory_space<vmem>>, vector<8x128xf32>
    %c1_i32 = arith.constant 1 : i32
    %1 = tpu.dynamic_rotate %0 by %c1_i32 dim 1 : vector<8x128xf32>, i32 -> vector<8x128xf32>
    %c0_1 = arith.constant 0 : index
    %c0_2 = arith.constant 0 : index
    %2 = vector.load %arg1[%c0_1, %c0_2] : memref<8x128xf32, #tpu.memory_space<vmem>>, vector<8x128xf32>
    tpu.vector_store %arg1[%c0_1, %c0_2], %1 {strides = array<i32>} : memref<8x128xf32, #tpu.memory_space<vmem>>, vector<8x128xf32>,
    return
  }
}

</mosaic_0001>

<llo_original>
// kernel: tpu_custom_call.1
$region0: #{tpu_custom_call.1}
  #allocation0 [shape = 'u32[]', space=smem, size = 0x4, offset = 0x4, fixed_abs, tag = 'smem constant byte address 0x4 - core index']
  #allocation1 [shape = 'u32[144,128]{1,0:T(1,128)}', space=vmem, size = 0x12000, scoped, tag = 'internal scratch']
  %s0 = inlined_call_operand.hbm [shape: f32[8,128], index: 0, kind: input, shape index: {}]
  %s1 = inlined_call_operand.hbm [shape: f32[8,128], index: 1, kind: output, shape index: {}]
  %s2 = sld [smem:[#allocation0]]
  $region18: #{tpu_custom_call.1} parent=0
    _
  %s4 = ssub.s32 1, %s2
  %s5 = scalar_select 0, %s4, %s2
  $region1: #{tpu_custom_call.1} parent=0
    #allocation2 [shape = 'u8[4096]{0}', space=vmem, size = 0x1000, scoped, tag = 'input window, operand 0, single buffered']
    #allocation3 [shape = 's32[1]{0}', space=sflag, size = 0x4, scoped, tag = 'scoped memory for tpu_custom_call.1']
    #allocation4 [shape = 's32[1]{0}', space=sflag, size = 0x4, scoped, tag = 'scoped memory for tpu_custom_call.1']
    #allocation5 [shape = 'u8[4096]{0}', space=vmem, size = 0x1000, scoped, tag = 'output window, operand 0, single buffered']
    %6 = vsyncpa [#allocation3], 0
    %7 = vsyncpa [#allocation4], 0
    // Predicated region
    $region2: #{tpu_custom_call.1} parent=1 // pred_check
      _
    $region3: #{tpu_custom_call.1} parent=1 // pred_check_branch
      %9 = sbr.rel (0) target = $region5
    $region4: #{tpu_custom_call.1} parent=1 // pred_region
      %s11 = ssub.s32 128, 128
      %12 = vsyncadd [#allocation3], %s11
      %s14 = sshll.u32 [#allocation2], 4
      %s15 = int_to_ptr.vmem [resolvable:$true] %s14
      %17 = dma.hbm_to_vmem [thread:$0]  %s0, 128, %s15, [#allocation3]
    $region5: #{tpu_custom_call.1} parent=1 // pred_fallthru
      _
    // Predicated region
    $region6: #{tpu_custom_call.1} parent=1 // pred_check
      _
    $region7: #{tpu_custom_call.1} parent=1 // pred_check_branch
      %19 = sbr.rel (0) target = $region9
    $region8: #{tpu_custom_call.1} parent=1 // pred_region
      %20 = dma.done [#allocation3], 128
    $region9: #{tpu_custom_call.1} parent=1 // pred_fallthru
      _
    %v21 = vld [vmem:[#allocation2] sm:$0xff]
    %22 = vrot.lane.b32.xlu0 %v21, 1
    %v23 = vpop.permute.xlu0 %22
    %24 = vst [vmem:[#allocation5] sm:$0xff] %v23
    // Predicated region
    $region10: #{tpu_custom_call.1} parent=1 // pred_check
      _
    $region11: #{tpu_custom_call.1} parent=1 // pred_check_branch
      %26 = sbr.rel (0) target = $region13
    $region12: #{tpu_custom_call.1} parent=1 // pred_region
      %s28 = ssub.s32 128, 128
      %29 = vsyncadd [#allocation4], %s28
      %s31 = sshll.u32 [#allocation5], 4
      %s32 = int_to_ptr.vmem [resolvable:$true] %s31
      %34 = dma.vmem_to_hbm [thread:$0]  %s32, 128, %s1, [#allocation4]
    $region13: #{tpu_custom_call.1} parent=1 // pred_fallthru
      _
    // Predicated region
    $region14: #{tpu_custom_call.1} parent=1 // pred_check
      _
    $region15: #{tpu_custom_call.1} parent=1 // pred_check_branch
      %36 = sbr.rel (0) target = $region17
    $region16: #{tpu_custom_call.1} parent=1 // pred_region
      %37 = dma.done [#allocation4], 128
    $region17: #{tpu_custom_call.1} parent=1 // pred_fallthru
      _
    %38 = vsyncpa [#allocation3], 1
    %39 = vsyncpa [#allocation4], 1

</llo_original>
